<compile_context>
chip_gen: v5e
topology: v5e:2x2
jax: 0.10.0
libtpu: 0.0.40
codegen_flags: <defaults>
</compile_context>

<pallas_src>
import jax
import jax.numpy as jnp
from jax import lax
from jax.experimental import pallas as pl
from jax.experimental.pallas import tpu as pltpu


def _light_kernel(p_ref, o_ref):
    # p_ref / o_ref: [4, blk] -- channels on the sublane axis, batch on lanes.
    # input rows:  0=dx, 1=dy, 2=z, 3=intensity
    # output rows: 0..2 = normalized direction (x, y, z), 3 = |intensity|
    dx = p_ref[0:1, :]
    dy = p_ref[1:2, :]
    dz = -jnp.abs(p_ref[2:3, :])          # torch: -abs(light_direction_z[idx])
    li = jnp.abs(p_ref[3:4, :])           # torch: abs(light_intensity[idx])

    ss = dx * dx + dy * dy + dz * dz
    # F.normalize(p=2, dim=-1): x / max(||x||, 1e-12)  ==  x * rsqrt(max(||x||^2, 1e-24))
    inv = lax.rsqrt(jnp.maximum(ss, jnp.float32(1e-24)))

    o_ref[0:1, :] = dx * inv
    o_ref[1:2, :] = dy * inv
    o_ref[2:3, :] = dz * inv
    o_ref[3:4, :] = li


def light_model_forward(idx, light_direction_xy, light_direction_z,
                        light_intensity, num_rays):
    """Equivalent of Light_Model.forward(idx) -> (out_ld, out_li)."""
    # Gather by idx (glue, plain JAX) and pack into a single lane-dense [4, B]
    # buffer: one DMA into the kernel, cheap sublane indexing inside.
    dx = light_direction_xy[idx, 0]
    dy = light_direction_xy[idx, 1]
    z = light_direction_z[idx, 0]
    li = light_intensity[idx, 0]
    packed = jnp.stack([dx, dy, z, li], axis=0).astype(jnp.float32)   # [4, B]
    B = packed.shape[1]

    LANE_BLOCK = 1024
    if B <= LANE_BLOCK:
        # Single block equal to the full array dims (satisfies the (8,128) rule).
        blk, Bp = B, B
    else:
        blk = LANE_BLOCK
        Bp = pl.cdiv(B, blk) * blk
        packed = jnp.pad(packed, ((0, 0), (0, Bp - B)))
        # Padded columns: ss = 0 -> inv = 1e12 (finite) -> outputs 0, sliced away.
    grid = (Bp // blk,)

    out = pl.pallas_call(
        _light_kernel,
        out_shape=jax.ShapeDtypeStruct((4, Bp), jnp.float32),
        grid=grid,
        in_specs=[pl.BlockSpec((4, blk), lambda i: (0, i))],
        out_specs=pl.BlockSpec((4, blk), lambda i: (0, i)),
        compiler_params=pltpu.CompilerParams(
            dimension_semantics=("parallel",)),
    )(packed)

    dirs = out[0:3, :B].T          # [B, 3]
    inten = out[3, :B]             # [B]

    # torch: out_ld[:, None, :].repeat(1, num_rays, 1).view(-1, 3)
    out_ld = jnp.broadcast_to(dirs[:, None, :], (B, num_rays, 3)).reshape(-1, 3)
    # torch: abs(li)[:, None, :].repeat(1, num_rays, 3).view(-1, 3)
    out_li = jnp.broadcast_to(inten[:, None, None], (B, num_rays, 3)).reshape(-1, 3)
    return out_ld, out_li


def make_params(light_init):
    """Mirror Light_Model.__init__ parameter construction."""
    light_direction, light_intensity_full = light_init
    light_direction_xy = light_direction[:, :-1].astype(jnp.float32)   # [L, 2]
    light_direction_z = light_direction[:, -1:].astype(jnp.float32)    # [L, 1]
    light_intensity = jnp.mean(light_intensity_full, axis=-1,
                               keepdims=True).astype(jnp.float32)      # [L, 1]
    return light_direction_xy, light_direction_z, light_intensity


if __name__ == "__main__":
    # deterministic synthetic "light_init": (directions [L,3], intensities [L,3])
    L = 16          # number of lights
    num_rays = 8    # rays per light
    key = jax.random.PRNGKey(0)
    k1, k2 = jax.random.split(key)
    light_direction_init = jax.random.normal(k1, (L, 3), dtype=jnp.float32)
    light_intensity_init = jax.random.uniform(k2, (L, 3), dtype=jnp.float32,
                                              minval=0.5, maxval=2.0)
    light_init = (light_direction_init, light_intensity_init)

    ld_xy, ld_z, li = make_params(light_init)

    idx = jnp.array([0, 3, 5, 7], dtype=jnp.int32)   # batch of light indices

    out_ld, out_li = light_model_forward(idx, ld_xy, ld_z, li, num_rays)
    out_ld, out_li = jax.block_until_ready((out_ld, out_li))

    # pure-JAX reference (same math as the PyTorch forward)
    d = jnp.concatenate([ld_xy[idx], -jnp.abs(ld_z[idx])], axis=-1)
    d = d / jnp.maximum(jnp.linalg.norm(d, axis=-1, keepdims=True), 1e-12)
    ref_ld = jnp.repeat(d, num_rays, axis=0)
    ref_li = jnp.repeat(jnp.abs(li[idx]), num_rays, axis=0) * jnp.ones((1, 3),
                                                                       jnp.float32)

    assert out_ld.shape == (idx.shape[0] * num_rays, 3)
    assert out_li.shape == (idx.shape[0] * num_rays, 3)
    assert jnp.allclose(out_ld, ref_ld, atol=1e-6, rtol=1e-6)
    assert jnp.allclose(out_li, ref_li, atol=1e-6, rtol=1e-6)

    print("KERNEL_OK")
</pallas_src>

<mosaic_0001>
module attributes {stable_mosaic.version = 11 : i64} {
  func.func @_light_kernel(%arg0: i32, %arg1: memref<4x4xf32, #tpu.memory_space<vmem>>, %arg2: memref<4x4xf32, #tpu.memory_space<vmem>>) attributes {dimension_semantics = [#tpu.dimension_semantics<parallel>], iteration_bounds = array<i64: 1>, scalar_prefetch = 0 : i64, scratch_operands = 0 : i64, tpu.core_type = #tpu.core_type<tc>, window_params = [{transform_indices = @transform_0, window_bounds = array<i64: 4, 4>}, {transform_indices = @transform_1, window_bounds = array<i64: 4, 4>}]} {
    %c0 = arith.constant 0 : index
    %c0_0 = arith.constant 0 : index
    %0 = vector.load %arg1[%c0, %c0_0] : memref<4x4xf32, #tpu.memory_space<vmem>>, vector<1x4xf32>
    %c1 = arith.constant 1 : index
    %c0_1 = arith.constant 0 : index
    %1 = vector.load %arg1[%c1, %c0_1] : memref<4x4xf32, #tpu.memory_space<vmem>>, vector<1x4xf32>
    %c2 = arith.constant 2 : index
    %c0_2 = arith.constant 0 : index
    %2 = vector.load %arg1[%c2, %c0_2] : memref<4x4xf32, #tpu.memory_space<vmem>>, vector<1x4xf32>
    %3 = math.absf %2 : vector<1x4xf32>
    %cst = arith.constant 0.000000e+00 : f32
    %4 = vector.broadcast %cst : f32 to vector<1x4xf32>
    %5 = arith.subf %4, %3 : vector<1x4xf32>
    %c3 = arith.constant 3 : index
    %c0_3 = arith.constant 0 : index
    %6 = vector.load %arg1[%c3, %c0_3] : memref<4x4xf32, #tpu.memory_space<vmem>>, vector<1x4xf32>
    %7 = math.absf %6 : vector<1x4xf32>
    %8 = arith.mulf %0, %0 : vector<1x4xf32>
    %9 = arith.mulf %1, %1 : vector<1x4xf32>
    %10 = arith.addf %8, %9 : vector<1x4xf32>
    %11 = arith.mulf %5, %5 : vector<1x4xf32>
    %12 = arith.addf %10, %11 : vector<1x4xf32>
    %cst_4 = arith.constant 1.000000e-24 : f32
    %13 = vector.broadcast %cst_4 : f32 to vector<1x4xf32>
    %14 = arith.maximumf %12, %13 : vector<1x4xf32>
    %15 = math.rsqrt %14 : vector<1x4xf32>
    %16 = arith.mulf %0, %15 : vector<1x4xf32>
    %c0_5 = arith.constant 0 : index
    %c0_6 = arith.constant 0 : index
    %17 = vector.load %arg2[%c0_5, %c0_6] : memref<4x4xf32, #tpu.memory_space<vmem>>, vector<1x4xf32>
    tpu.vector_store %arg2[%c0_5, %c0_6], %16 {strides = array<i32>} : memref<4x4xf32, #tpu.memory_space<vmem>>, vector<1x4xf32>,
    %18 = arith.mulf %1, %15 : vector<1x4xf32>
    %c1_7 = arith.constant 1 : index
    %c0_8 = arith.constant 0 : index
    %19 = vector.load %arg2[%c1_7, %c0_8] : memref<4x4xf32, #tpu.memory_space<vmem>>, vector<1x4xf32>
    tpu.vector_store %arg2[%c1_7, %c0_8], %18 {strides = array<i32>} : memref<4x4xf32, #tpu.memory_space<vmem>>, vector<1x4xf32>,
    %20 = arith.mulf %5, %15 : vector<1x4xf32>
    %c2_9 = arith.constant 2 : index
    %c0_10 = arith.constant 0 : index
    %21 = vector.load %arg2[%c2_9, %c0_10] : memref<4x4xf32, #tpu.memory_space<vmem>>, vector<1x4xf32>
    tpu.vector_store %arg2[%c2_9, %c0_10], %20 {strides = array<i32>} : memref<4x4xf32, #tpu.memory_space<vmem>>, vector<1x4xf32>,
    %c3_11 = arith.constant 3 : index
    %c0_12 = arith.constant 0 : index
    %22 = vector.load %arg2[%c3_11, %c0_12] : memref<4x4xf32, #tpu.memory_space<vmem>>, vector<1x4xf32>
    tpu.vector_store %arg2[%c3_11, %c0_12], %7 {strides = array<i32>} : memref<4x4xf32, #tpu.memory_space<vmem>>, vector<1x4xf32>,
    return
  }
  func.func @transform_0(%arg0: i32) -> (i32, i32) {
    %c0_i32 = arith.constant 0 : i32
    %c0_i32_0 = arith.constant 0 : i32
    return %c0_i32, %arg0 : i32, i32
  }
  func.func @transform_1(%arg0: i32) -> (i32, i32) {
    %c0_i32 = arith.constant 0 : i32
    %c0_i32_0 = arith.constant 0 : i32
    return %c0_i32, %arg0 : i32, i32
  }
}

</mosaic_0001>

<llo_original>
// kernel: tpu_custom_call.1
$region0: #{tpu_custom_call.1}
  #allocation0 [shape = 'u32[]', space=smem, size = 0x4, offset = 0x4, fixed_abs, tag = 'smem constant byte address 0x4 - core index']
  #allocation1 [shape = 'u32[72,128]{1,0:T(1,128)}', space=vmem, size = 0x9000, scoped, tag = 'internal scratch']
  %s0 = inlined_call_operand.hbm [shape: f32[4,4], index: 0, kind: input, shape index: {}]
  %s1 = inlined_call_operand.hbm [shape: f32[4,4], index: 1, kind: output, shape index: {}]
  %s2 = sld [smem:[#allocation0]]
  $region18: #{tpu_custom_call.1} parent=0
    _
  %s4 = ssub.s32 1, %s2
  %s5 = scalar_select 0, %s4, %s2
  $region1: #{tpu_custom_call.1} parent=0
    #allocation2 [shape = 'u8[2048]{0}', space=vmem, size = 0x800, scoped, tag = 'input window, operand 0, single buffered']
    #allocation3 [shape = 's32[1]{0}', space=sflag, size = 0x4, scoped, tag = 'scoped memory for tpu_custom_call.1']
    #allocation4 [shape = 's32[1]{0}', space=sflag, size = 0x4, scoped, tag = 'scoped memory for tpu_custom_call.1']
    #allocation5 [shape = 'u8[2048]{0}', space=vmem, size = 0x800, scoped, tag = 'output window, operand 0, single buffered']
    %6 = vsyncpa [#allocation3], 0
    %7 = vsyncpa [#allocation4], 0
    // Predicated region
    $region2: #{tpu_custom_call.1} parent=1 // pred_check
      _
    $region3: #{tpu_custom_call.1} parent=1 // pred_check_branch
      %9 = sbr.rel (0) target = $region5
    $region4: #{tpu_custom_call.1} parent=1 // pred_region
      %11 = vsyncadd [#allocation3], 0
      %s13 = sshll.u32 %s0, 4
      %s14 = int_to_ptr.hbm [resolvable:$true] %s13
      %s15 = sshll.u32 [#allocation2], 4
      %s16 = int_to_ptr.vmem [resolvable:$true] %s15
      %18 = dma.hbm_to_vmem [thread:$0]  %s14, 64, %s16, [#allocation3]
    $region5: #{tpu_custom_call.1} parent=1 // pred_fallthru
      _
    // Predicated region
    $region6: #{tpu_custom_call.1} parent=1 // pred_check
      _
    $region7: #{tpu_custom_call.1} parent=1 // pred_check_branch
      %20 = sbr.rel (0) target = $region9
    $region8: #{tpu_custom_call.1} parent=1 // pred_region
      %22 = dma.done [#allocation3], 64
    $region9: #{tpu_custom_call.1} parent=1 // pred_fallthru
      _
    %v23 = vld [vmem:[#allocation2] sm:$0x1]
    %v24 = vld [vmem:[#allocation2 + $0x1] sm:$0x1]
    %v25 = vld [vmem:[#allocation2 + $0x2] sm:$0x1]
    %v26 = vand.u32 2147483647, %v25
    %v27 = vsub.f32 0.0, %v26
    %v28 = vld [vmem:[#allocation2 + $0x3] sm:$0x1]
    %v29 = vand.u32 2147483647, %v28
    %v30 = vmul.f32 %v23, %v23
    %v31 = vmul.f32 %v24, %v24
    %v32 = vadd.f32 %v30, %v31
    %v33 = vmul.f32 %v27, %v27
    %v34 = vadd.f32 %v32, %v33
    %v35 = vmax.f32 %v34, 1e-24
    %v36 = vrsqrt.pop %v35
    %v37 = vmul.f32 %v36, %v35
    %v38 = vmul.f32 %v37, %v36
    %v39 = vmul.f32 0.5, %v38
    %v40 = vsub.f32 1.5, %v39
    %v41 = vmul.f32 %v36, %v40
    %vm42 = vweird.f32 %v35
    %vm43 = vweird.f32 %v36
    %vm44 = vmor %vm42, %vm43
    %v45 = vsel %vm44, %v36, %v41
    %v46 = vmul.f32 %v23, %v45
    %vm47 = vcmask 24576
    %48 = vst.msk [vmem:[#allocation5] sm:$0x1] %vm47, %v46
    %v49 = vmul.f32 %v24, %v45
    %50 = vst.msk [vmem:[#allocation5 + $0x1] sm:$0x1] %vm47, %v49
    %v51 = vmul.f32 %v27, %v45
    %52 = vst.msk [vmem:[#allocation5 + $0x2] sm:$0x1] %vm47, %v51
    %53 = vst.msk [vmem:[#allocation5 + $0x3] sm:$0x1] %vm47, %v29
    // Predicated region
    $region10: #{tpu_custom_call.1} parent=1 // pred_check
      _
    $region11: #{tpu_custom_call.1} parent=1 // pred_check_branch
      %55 = sbr.rel (0) target = $region13
    $region12: #{tpu_custom_call.1} parent=1 // pred_region
      %57 = vsyncadd [#allocation4], 0
      %s59 = sshll.u32 [#allocation5], 4
      %s60 = int_to_ptr.vmem [resolvable:$true] %s59
      %s61 = sshll.u32 %s1, 4
      %s62 = int_to_ptr.hbm [resolvable:$true] %s61
      %64 = dma.vmem_to_hbm [thread:$0]  %s60, 64, %s62, [#allocation4]
    $region13: #{tpu_custom_call.1} parent=1 // pred_fallthru
      _
    // Predicated region
    $region14: #{tpu_custom_call.1} parent=1 // pred_check
      _
    $region15: #{tpu_custom_call.1} parent=1 // pred_check_branch
      %66 = sbr.rel (0) target = $region17
    $region16: #{tpu_custom_call.1} parent=1 // pred_region
      %68 = dma.done [#allocation4], 64
    $region17: #{tpu_custom_call.1} parent=1 // pred_fallthru
      _
    %69 = vsyncpa [#allocation3], 1
    %70 = vsyncpa [#allocation4], 1

</llo_original>
